<compile_context>
chip_gen: v7x
topology: tpu7x:2x2x1
jax: 0.10.0
libtpu: 0.0.40
codegen_flags: <defaults>
</compile_context>

<pallas_src>
import functools

import jax
import jax.numpy as jnp
from jax.experimental import pallas as pl
from jax.experimental.pallas import tpu as pltpu

LANES = 128               # lane width: last dim of every 2-D block
SUBLANE_PACK = 32         # row multiple covering f32(8,128)/bf16(16,128)/int8(32,128) packing
MIN_PALLAS_ELEMS = 16384  # below this, a fused XLA elementwise op beats a kernel launch
SPLIT_ROWS = 2048         # above this many 128-lane rows, split into >= 4 blocks (dual-TC v7x)


def _round_up(n, m):
    return ((n + m - 1) // m) * m


def _round_down(n, m):
    return (n // m) * m


@functools.lru_cache(maxsize=1)
def _vmem_capacity_bytes():
    """Physical VMEM per core; conservative fallback if the query fails."""
    try:
        return int(pltpu.get_tpu_info().vmem_capacity_bytes)
    except Exception:
        return 64 << 20   # v7x per-TC VMEM: smallest of the current generations


def _vmem_limit_bytes():
    # Never ask for more than 40 MiB of scoped VMEM, and always leave at least
    # half of physical VMEM to the compiler (v7x -> 32 MiB, v5e/v6e -> 40 MiB).
    return int(min(40 << 20, max(_vmem_capacity_bytes() // 2, 8 << 20)))


def _max_block_rows(itemsize):
    # Per-buffer block budget: in + out, double-buffered = 4 buffers, plus ~20%
    # headroom -> limit/5 per buffer (f32: ~16K rows on v5e/v6e, ~13K on v7x).
    block_bytes = max(_vmem_limit_bytes() // 5, 1 << 20)
    rows = _round_down(block_bytes // (LANES * itemsize), SUBLANE_PACK)
    return max(rows, SUBLANE_PACK)


def _swish_kernel(x_ref, o_ref, *, beta, compute_dtype):
    x = x_ref[...].astype(compute_dtype)
    # sigmoid(z) = 0.5 * tanh(0.5 * z) + 0.5 -> one EUP op plus cheap VALU
    # mul/adds (instead of exp + divide, two transcendental-path ops).
    sig = 0.5 * jnp.tanh(x * (0.5 * beta)) + 0.5
    o_ref[...] = (x * sig).astype(o_ref.dtype)


def _swish_jax(x, beta, compute_dtype):
    xc = x.astype(compute_dtype)
    y = xc * (0.5 * jnp.tanh(xc * (0.5 * beta)) + 0.5)
    return y.astype(x.dtype)


def swish_pallas(x, beta=1.25, *, block_rows=None, min_pallas_elems=MIN_PALLAS_ELEMS):
    """Elementwise x * sigmoid(beta * x).

    block_rows: optional override of the per-block row count (rows of 128 lanes);
      mainly for exercising the multi-block / masked paths at small sizes.
    min_pallas_elems: inputs smaller than this use a plain fused-XLA path
      (the fixed pallas_call launch cost dominates for tiny tensors).
    """
    orig_shape = x.shape
    orig_dtype = x.dtype
    total = x.size
    if total == 0:
        return x

    beta = float(beta)
    if orig_dtype in (jnp.float32, jnp.bfloat16):
        compute_dtype = orig_dtype            # native bf16 VPU/EUP on v6e/v7x
    else:
        compute_dtype = jnp.float32

    if total < max(int(min_pallas_elems), 1):
        return _swish_jax(x, beta, compute_dtype)

    kernel = functools.partial(_swish_kernel, beta=beta, compute_dtype=compute_dtype)
    compiler_params = pltpu.CompilerParams(
        # Independent blocks: sharded across both TensorCores on v7x,
        # harmless on single-TC v5e/v6e.
        dimension_semantics=("parallel",),
        vmem_limit_bytes=_vmem_limit_bytes(),
    )
    max_rows = _max_block_rows(x.dtype.itemsize)
    x_flat = jnp.ravel(x)

    if total % LANES == 0:
        # Lane-aligned bulk: 2-D (rows, 128) slab.
        rows = total // LANES
        if block_rows is not None:
            br = max(min(int(block_rows), rows), 1)
            if br < rows:
                br = min(_round_up(br, 8), rows)   # non-full blocks: sublane-aligned
        elif rows <= SPLIT_ROWS:
            br = min(rows, max_rows)               # single (or few) full-extent block(s)
        else:
            # >= 4 blocks (dual-TC occupancy) but within the VMEM block budget.
            br = min(max_rows, _round_up(pl.cdiv(rows, 4), SUBLANE_PACK))
        out = pl.pallas_call(
            kernel,
            out_shape=jax.ShapeDtypeStruct((rows, LANES), orig_dtype),
            grid=(pl.cdiv(rows, br),),
            in_specs=[pl.BlockSpec((br, LANES), lambda i: (i, 0))],
            out_specs=pl.BlockSpec((br, LANES), lambda i: (i, 0)),
            compiler_params=compiler_params,
        )(x_flat.reshape(rows, LANES))
        return out.reshape(orig_shape)

    # Lane-ragged total: one flat 1-D pallas_call; the partial final block is
    # masked by Pallas. No input slice, no output concatenate, no jnp.pad.
    max_block_elems = max_rows * LANES
    if block_rows is not None:
        block_elems = max(int(block_rows), 1) * LANES
    else:
        block_elems = min(max_block_elems,
                          _round_up(pl.cdiv(total, 4), SUBLANE_PACK * LANES))
    if block_elems >= total:
        block_elems = total   # single full-extent block (exempt from the 128 rule)
    out_flat = pl.pallas_call(
        kernel,
        out_shape=jax.ShapeDtypeStruct((total,), orig_dtype),
        grid=(pl.cdiv(total, block_elems),),
        in_specs=[pl.BlockSpec((block_elems,), lambda i: (i,))],
        out_specs=pl.BlockSpec((block_elems,), lambda i: (i,)),
        compiler_params=compiler_params,
    )(x_flat)
    return out_flat.reshape(orig_shape)


class Swish:
    """Mirror of the PyTorch module: forward(x) = x * sigmoid(beta * x)."""

    def __init__(self, beta=1.25, **kwargs):
        self.beta = beta

    def __call__(self, x):
        return swish_pallas(x, self.beta)


if __name__ == "__main__":
    key = jax.random.PRNGKey(0)
    k1, k2, k3, k4 = jax.random.split(key, 4)
    beta = 1.25

    # 1) Primary shape (NCHW conv activation), f32, lane-aligned single-block path.
    x1 = jax.random.normal(k1, (2, 4, 16, 16), dtype=jnp.float32)
    out1 = swish_pallas(x1, beta=beta, min_pallas_elems=0)   # force the Pallas path
    jax.block_until_ready(out1)
    ref1 = x1 * jax.nn.sigmoid(beta * x1)
    assert out1.shape == x1.shape and out1.dtype == x1.dtype
    assert jnp.max(jnp.abs(out1 - ref1)) < 1e-5

    # 2) Multi-block 2-D path (grid > 1), f32.
    x2 = jax.random.normal(k2, (4, 8, 32, 32), dtype=jnp.float32)
    out2 = swish_pallas(x2, beta=beta, min_pallas_elems=0, block_rows=64)
    ref2 = x2 * jax.nn.sigmoid(beta * x2)
    assert jnp.max(jnp.abs(out2 - ref2)) < 1e-5

    # 3) Lane-ragged total (not a multiple of 128): flat 1-D masked path, grid > 1.
    x3 = jax.random.normal(k3, (10000,), dtype=jnp.float32)
    out3 = swish_pallas(x3, beta=beta, min_pallas_elems=0, block_rows=16)
    ref3 = x3 * jax.nn.sigmoid(beta * x3)
    assert out3.shape == x3.shape
    assert jnp.max(jnp.abs(out3 - ref3)) < 1e-5

    # 4) bf16 input: native bf16 compute path.
    x4 = jax.random.normal(k4, (2, 4, 16, 16), dtype=jnp.bfloat16)
    out4 = swish_pallas(x4, beta=beta, min_pallas_elems=0)
    x4f = x4.astype(jnp.float32)
    ref4 = x4f * jax.nn.sigmoid(beta * x4f)
    assert out4.dtype == jnp.bfloat16
    assert jnp.max(jnp.abs(out4.astype(jnp.float32) - ref4)) < 5e-2

    # 5) Module-style call (small tensor -> plain-XLA fallback by default).
    out5 = Swish(beta)(x1)
    assert jnp.max(jnp.abs(out5 - ref1)) < 1e-5

    jax.block_until_ready((out1, out2, out3, out4, out5))
    print("KERNEL_OK")
</pallas_src>

<mosaic_0001>
module attributes {stable_mosaic.version = 11 : i64} {
  func.func @_swish_kernel(%arg0: i32, %arg1: memref<16x128xf32, #tpu.memory_space<vmem>>, %arg2: memref<16x128xf32, #tpu.memory_space<vmem>>) attributes {dimension_semantics = [#tpu.dimension_semantics<parallel>], iteration_bounds = array<i64: 1>, scalar_prefetch = 0 : i64, scratch_operands = 0 : i64, tpu.core_type = #tpu.core_type<tc>, window_params = [{transform_indices = @transform_0, window_bounds = array<i64: 16, 128>}, {transform_indices = @transform_1, window_bounds = array<i64: 16, 128>}]} {
    %c0 = arith.constant 0 : index
    %c0_0 = arith.constant 0 : index
    %0 = vector.load %arg1[%c0, %c0_0] : memref<16x128xf32, #tpu.memory_space<vmem>>, vector<16x128xf32>
    %cst = arith.constant 6.250000e-01 : f32
    %1 = vector.broadcast %cst : f32 to vector<16x128xf32>
    %2 = arith.mulf %0, %1 : vector<16x128xf32>
    %3 = math.tanh %2 : vector<16x128xf32>
    %cst_1 = arith.constant 5.000000e-01 : f32
    %4 = vector.broadcast %cst_1 : f32 to vector<16x128xf32>
    %5 = arith.mulf %4, %3 : vector<16x128xf32>
    %cst_2 = arith.constant 5.000000e-01 : f32
    %6 = vector.broadcast %cst_2 : f32 to vector<16x128xf32>
    %7 = arith.addf %5, %6 : vector<16x128xf32>
    %8 = arith.mulf %0, %7 : vector<16x128xf32>
    %c0_3 = arith.constant 0 : index
    %c0_4 = arith.constant 0 : index
    %9 = vector.load %arg2[%c0_3, %c0_4] : memref<16x128xf32, #tpu.memory_space<vmem>>, vector<16x128xf32>
    tpu.vector_store %arg2[%c0_3, %c0_4], %8 {strides = array<i32>} : memref<16x128xf32, #tpu.memory_space<vmem>>, vector<16x128xf32>,
    return
  }
  func.func @transform_0(%arg0: i32) -> (i32, i32) {
    %c0_i32 = arith.constant 0 : i32
    %c0_i32_0 = arith.constant 0 : i32
    return %arg0, %c0_i32 : i32, i32
  }
  func.func @transform_1(%arg0: i32) -> (i32, i32) {
    %c0_i32 = arith.constant 0 : i32
    %c0_i32_0 = arith.constant 0 : i32
    return %arg0, %c0_i32 : i32, i32
  }
}

</mosaic_0001>

<llo_original>
// kernel: tpu_custom_call.1
$region0: #{tpu_custom_call.1}
  #allocation0 [shape = 'u32[]', space=smem, size = 0x4, offset = 0x4, fixed_abs, tag = 'smem constant byte address 0x4 - core index']
  #allocation1 [shape = 'u32[144,128]{1,0:T(1,128)}', space=vmem, size = 0x12000, scoped, tag = 'internal scratch']
  %s0 = inlined_call_operand.hbm [shape: f32[16,128], index: 0, kind: input, shape index: {}]
  %s1 = inlined_call_operand.hbm [shape: f32[16,128], index: 1, kind: output, shape index: {}]
  %s2 = sld [smem:[#allocation0]]
  $region18: #{tpu_custom_call.1} parent=0
    _
  %s4 = ssub.s32 1, %s2
  %s5 = scalar_select 0, %s4, %s2
  $region1: #{tpu_custom_call.1} parent=0
    #allocation2 [shape = 'u8[8192]{0}', space=vmem, size = 0x2000, scoped, tag = 'input window, operand 0, single buffered']
    #allocation3 [shape = 's32[1]{0}', space=sflag, size = 0x4, scoped, tag = 'scoped memory for tpu_custom_call.1']
    #allocation4 [shape = 's32[1]{0}', space=sflag, size = 0x4, scoped, tag = 'scoped memory for tpu_custom_call.1']
    #allocation5 [shape = 'u8[8192]{0}', space=vmem, size = 0x2000, scoped, tag = 'output window, operand 0, single buffered']
    %6 = vsyncpa [#allocation3], 0
    %7 = vsyncpa [#allocation4], 0
    // Predicated region
    $region2: #{tpu_custom_call.1} parent=1 // pred_check
      _
    $region3: #{tpu_custom_call.1} parent=1 // pred_check_branch
      %9 = sbr.rel (0) target = $region5
    $region4: #{tpu_custom_call.1} parent=1 // pred_region
      %s11 = ssub.s32 256, 256
      %12 = vsyncadd [#allocation3], %s11
      %s13 = sshll.u32 [#allocation2], 4
      %s14 = int_to_ptr.vmem [resolvable:$true] %s13
      %19 = dma.hbm_to_vmem [thread:$0]  %s0, 256, %s14, [#allocation3], 128, 128, 8
    $region5: #{tpu_custom_call.1} parent=1 // pred_fallthru
      _
    // Predicated region
    $region6: #{tpu_custom_call.1} parent=1 // pred_check
      _
    $region7: #{tpu_custom_call.1} parent=1 // pred_check_branch
      %21 = sbr.rel (0) target = $region9
    $region8: #{tpu_custom_call.1} parent=1 // pred_region
      %22 = dma.done [#allocation3], 256
    $region9: #{tpu_custom_call.1} parent=1 // pred_fallthru
      _
    %v23 = vld [vmem:[#allocation2] sm:$0xff]
    %v24 = vld [vmem:[#allocation2 + $0x8] sm:$0xff]
    %v25 = vmul.f32 %v23, 0.625
    %v26 = vmul.f32 %v24, 0.625
    %v27 = vtanh.pop %v25
    %v28 = vtanh.pop %v26
    %v29 = vmul.f32 %v27, 0.5
    %v30 = vmul.f32 %v28, 0.5
    %v31 = vadd.f32 %v29, 0.5
    %v32 = vadd.f32 %v30, 0.5
    %v33 = vmul.f32 %v23, %v31
    %v34 = vmul.f32 %v24, %v32
    %35 = vst [vmem:[#allocation5] sm:$0xff] %v33
    %36 = vst [vmem:[#allocation5 + $0x8] sm:$0xff] %v34
    // Predicated region
    $region10: #{tpu_custom_call.1} parent=1 // pred_check
      _
    $region11: #{tpu_custom_call.1} parent=1 // pred_check_branch
      %38 = sbr.rel (0) target = $region13
    $region12: #{tpu_custom_call.1} parent=1 // pred_region
      %s40 = ssub.s32 256, 256
      %41 = vsyncadd [#allocation4], %s40
      %s42 = sshll.u32 [#allocation5], 4
      %s43 = int_to_ptr.vmem [resolvable:$true] %s42
      %48 = dma.vmem_to_hbm [thread:$0]  %s43, 256, %s1, [#allocation4], 128, 128, 8
    $region13: #{tpu_custom_call.1} parent=1 // pred_fallthru
      _
    // Predicated region
    $region14: #{tpu_custom_call.1} parent=1 // pred_check
      _
    $region15: #{tpu_custom_call.1} parent=1 // pred_check_branch
      %50 = sbr.rel (0) target = $region17
    $region16: #{tpu_custom_call.1} parent=1 // pred_region
      %51 = dma.done [#allocation4], 256
    $region17: #{tpu_custom_call.1} parent=1 // pred_fallthru
      _
    %52 = vsyncpa [#allocation3], 1
    %53 = vsyncpa [#allocation4], 1

</llo_original>
